<compile_context>
chip_gen: v7x
topology: tpu7x:2x2x1
jax: 0.10.0
libtpu: 0.0.40
codegen_flags: <defaults>
</compile_context>

<pallas_src>
import jax
import jax.numpy as jnp
from jax.experimental import pallas as pl
from jax.experimental.pallas import tpu as pltpu


def _xor_mlp_kernel(p_ref, xt_ref, o_ref):
    # p_ref:  SMEM (9,) f32 = [w1_00, w1_01, w1_10, w1_11, b1_0, b1_1,
    #                          w2_00, w2_01, b2_0]  (PyTorch Linear (out, in) layout)
    # xt_ref: VMEM (2, TR, W) f32 -- batch dense over sublanes (TR) and lanes (W)
    # o_ref:  VMEM (TR, W) f32    -- fully dense output tile
    x0 = xt_ref[0]                   # (TR, W) dense load, no sublane extraction
    x1 = xt_ref[1]                   # (TR, W)

    # Parameters as SMEM scalars, broadcast against dense tiles (pure VPU + EUP).
    w1_00 = p_ref[0]
    w1_01 = p_ref[1]
    w1_10 = p_ref[2]
    w1_11 = p_ref[3]
    b1_0 = p_ref[4]
    b1_1 = p_ref[5]
    w2_00 = p_ref[6]
    w2_01 = p_ref[7]
    b2_0 = p_ref[8]

    # hidden_j = tanh(sum_i x_i * w1[j, i] + b1[j])
    h0 = jnp.tanh(x0 * w1_00 + x1 * w1_01 + b1_0)
    h1 = jnp.tanh(x0 * w1_10 + x1 * w1_11 + b1_1)

    # out = sigmoid(h0 * w2[0,0] + h1 * w2[0,1] + b2[0])
    z = h0 * w2_00 + h1 * w2_01 + b2_0
    # sigmoid(z) == 0.5 * tanh(z / 2) + 0.5 : a single EUP push per element.
    o_ref[...] = (0.5 * jnp.tanh(0.5 * z) + 0.5).astype(o_ref.dtype)


def xor_mlp_forward(x, w1, b1, w2, b2, *, lanes=1024, tile_rows=256):
    """Forward pass of MyModel.

    x:  (N, 2) f32
    w1: (2, 2), b1: (2,)   -- in_hid  (PyTorch Linear layout: (out, in))
    w2: (1, 2), b2: (1,)   -- hid_out
    returns (N, 1) f32
    """
    n = x.shape[0]
    W = int(lanes)                                     # lane width, multiple of 128

    # Rows of W lanes needed to hold the batch; align rows to the 8-sublane tile.
    rows_needed = max(int(pl.cdiv(n, W)), 1)
    rows_needed = int(pl.cdiv(rows_needed, 8)) * 8

    # Per-step row count: multiple of 8, capped so the double-buffered
    # (input + output) blocks stay ~6 MiB (safe on v5e's 16 MiB scoped VMEM
    # and v7x's 64 MiB physical / 32 MiB default-scoped VMEM per TC).
    tr = min(int(tile_rows), rows_needed)
    tr = max(8, int(pl.cdiv(tr, 8)) * 8)
    if rows_needed > 8 and tr == rows_needed:
        # Split into >= 2 tiles so v7x's two TensorCores both get work.
        tr = max(8, int(pl.cdiv(rows_needed // 2, 8)) * 8)

    rows = int(pl.cdiv(rows_needed, tr)) * tr
    n_pad = rows * W
    grid = (rows // tr,)

    # Single fused transpose + pad + reshape to the feature-planar (2, rows, W)
    # layout (no zeros + .at[].set round trip).
    # TODO(synk): produce x feature-planar upstream to drop this transpose pass.
    xt = jnp.pad(x.astype(jnp.float32).T, ((0, 0), (0, n_pad - n))).reshape(
        2, rows, W
    )

    # Pack the 9 parameters into one flat f32 SMEM array.
    params = jnp.concatenate(
        [w1.reshape(-1), b1.reshape(-1), w2.reshape(-1), b2.reshape(-1)]
    ).astype(jnp.float32)                              # (9,)

    out = pl.pallas_call(
        _xor_mlp_kernel,
        out_shape=jax.ShapeDtypeStruct((rows, W), jnp.float32),
        grid=grid,
        in_specs=[
            pl.BlockSpec(memory_space=pltpu.SMEM),            # params, whole array
            pl.BlockSpec((2, tr, W), lambda i: (0, i, 0)),    # x, dense row tiles
        ],
        out_specs=pl.BlockSpec((tr, W), lambda i: (i, 0)),
        compiler_params=pltpu.CompilerParams(
            dimension_semantics=("parallel",),
        ),
    )(params, xt)

    return out.reshape(-1)[:n].reshape(n, 1)


def _reference_forward(x, w1, b1, w2, b2):
    hid = jnp.tanh(x @ w1.T + b1)
    return jax.nn.sigmoid(hid @ w2.T + b2)


if __name__ == "__main__":
    key = jax.random.PRNGKey(0)
    k1, k2, k3, k4, k5 = jax.random.split(key, 5)

    # Deterministic parameter init (shapes from MyModel.__init__):
    #   in_hid:  Linear(2, 2)  -> weight (2, 2), bias (2,)
    #   hid_out: Linear(2, 1)  -> weight (1, 2), bias (1,)
    w1 = jax.random.uniform(k1, (2, 2), jnp.float32, minval=-0.7, maxval=0.7)
    b1 = jax.random.uniform(k2, (2,), jnp.float32, minval=-0.7, maxval=0.7)
    w2 = jax.random.uniform(k3, (1, 2), jnp.float32, minval=-0.7, maxval=0.7)
    b2 = jax.random.uniform(k4, (1,), jnp.float32, minval=-0.7, maxval=0.7)

    # 1) The XOR truth-table input from the original script (N = 4).
    x_small = jnp.array(
        [[0.0, 0.0], [0.0, 1.0], [1.0, 0.0], [1.0, 1.0]], dtype=jnp.float32
    )
    out_small = jax.block_until_ready(xor_mlp_forward(x_small, w1, b1, w2, b2))
    ref_small = _reference_forward(x_small, w1, b1, w2, b2)
    assert out_small.shape == (4, 1)
    assert jnp.allclose(out_small, ref_small, atol=1e-5, rtol=1e-5)

    # 2) A larger ragged batch that exercises padding and a >=2-step parallel grid.
    x_big = jax.random.uniform(k5, (20000, 2), jnp.float32)
    out_big = jax.block_until_ready(xor_mlp_forward(x_big, w1, b1, w2, b2))
    ref_big = _reference_forward(x_big, w1, b1, w2, b2)
    assert out_big.shape == (20000, 1)
    assert jnp.allclose(out_big, ref_big, atol=1e-5, rtol=1e-5)

    print("KERNEL_OK")
</pallas_src>

<mosaic_0001>
module attributes {stable_mosaic.version = 11 : i64} {
  func.func @_xor_mlp_kernel(%arg0: i32, %arg1: memref<9xf32, #tpu.memory_space<smem>>, %arg2: memref<2x8x1024xf32, #tpu.memory_space<vmem>>, %arg3: memref<8x1024xf32, #tpu.memory_space<vmem>>) attributes {dimension_semantics = [#tpu.dimension_semantics<parallel>], iteration_bounds = array<i64: 1>, scalar_prefetch = 0 : i64, scratch_operands = 0 : i64, tpu.core_type = #tpu.core_type<tc>, window_params = [{transform_indices = @transform_0, window_bounds = array<i64: 9>}, {transform_indices = @transform_1, window_bounds = array<i64: 2, 8, 1024>}, {transform_indices = @transform_2, window_bounds = array<i64: 8, 1024>}]} {
    %c0 = arith.constant 0 : index
    %c0_0 = arith.constant 0 : index
    %c0_1 = arith.constant 0 : index
    %0 = vector.load %arg2[%c0, %c0_0, %c0_1] : memref<2x8x1024xf32, #tpu.memory_space<vmem>>, vector<1x8x1024xf32>
    %1 = vector.shape_cast %0 : vector<1x8x1024xf32> to vector<8x1024xf32>
    %c1 = arith.constant 1 : index
    %c0_2 = arith.constant 0 : index
    %c0_3 = arith.constant 0 : index
    %2 = vector.load %arg2[%c1, %c0_2, %c0_3] : memref<2x8x1024xf32, #tpu.memory_space<vmem>>, vector<1x8x1024xf32>
    %3 = vector.shape_cast %2 : vector<1x8x1024xf32> to vector<8x1024xf32>
    %c0_4 = arith.constant 0 : index
    %4 = memref.load %arg1[%c0_4] : memref<9xf32, #tpu.memory_space<smem>>
    %c1_5 = arith.constant 1 : index
    %5 = memref.load %arg1[%c1_5] : memref<9xf32, #tpu.memory_space<smem>>
    %c2 = arith.constant 2 : index
    %6 = memref.load %arg1[%c2] : memref<9xf32, #tpu.memory_space<smem>>
    %c3 = arith.constant 3 : index
    %7 = memref.load %arg1[%c3] : memref<9xf32, #tpu.memory_space<smem>>
    %c4 = arith.constant 4 : index
    %8 = memref.load %arg1[%c4] : memref<9xf32, #tpu.memory_space<smem>>
    %c5 = arith.constant 5 : index
    %9 = memref.load %arg1[%c5] : memref<9xf32, #tpu.memory_space<smem>>
    %c6 = arith.constant 6 : index
    %10 = memref.load %arg1[%c6] : memref<9xf32, #tpu.memory_space<smem>>
    %c7 = arith.constant 7 : index
    %11 = memref.load %arg1[%c7] : memref<9xf32, #tpu.memory_space<smem>>
    %c8 = arith.constant 8 : index
    %12 = memref.load %arg1[%c8] : memref<9xf32, #tpu.memory_space<smem>>
    %13 = vector.broadcast %4 : f32 to vector<8x1024xf32>
    %14 = arith.mulf %1, %13 : vector<8x1024xf32>
    %15 = vector.broadcast %5 : f32 to vector<8x1024xf32>
    %16 = arith.mulf %3, %15 : vector<8x1024xf32>
    %17 = arith.addf %14, %16 : vector<8x1024xf32>
    %18 = vector.broadcast %8 : f32 to vector<8x1024xf32>
    %19 = arith.addf %17, %18 : vector<8x1024xf32>
    %20 = math.tanh %19 : vector<8x1024xf32>
    %21 = vector.broadcast %6 : f32 to vector<8x1024xf32>
    %22 = arith.mulf %1, %21 : vector<8x1024xf32>
    %23 = vector.broadcast %7 : f32 to vector<8x1024xf32>
    %24 = arith.mulf %3, %23 : vector<8x1024xf32>
    %25 = arith.addf %22, %24 : vector<8x1024xf32>
    %26 = vector.broadcast %9 : f32 to vector<8x1024xf32>
    %27 = arith.addf %25, %26 : vector<8x1024xf32>
    %28 = math.tanh %27 : vector<8x1024xf32>
    %29 = vector.broadcast %10 : f32 to vector<8x1024xf32>
    %30 = arith.mulf %20, %29 : vector<8x1024xf32>
    %31 = vector.broadcast %11 : f32 to vector<8x1024xf32>
    %32 = arith.mulf %28, %31 : vector<8x1024xf32>
    %33 = arith.addf %30, %32 : vector<8x1024xf32>
    %34 = vector.broadcast %12 : f32 to vector<8x1024xf32>
    %35 = arith.addf %33, %34 : vector<8x1024xf32>
    %cst = arith.constant 5.000000e-01 : f32
    %36 = vector.broadcast %cst : f32 to vector<8x1024xf32>
    %37 = arith.mulf %36, %35 : vector<8x1024xf32>
    %38 = math.tanh %37 : vector<8x1024xf32>
    %cst_6 = arith.constant 5.000000e-01 : f32
    %39 = vector.broadcast %cst_6 : f32 to vector<8x1024xf32>
    %40 = arith.mulf %39, %38 : vector<8x1024xf32>
    %cst_7 = arith.constant 5.000000e-01 : f32
    %41 = vector.broadcast %cst_7 : f32 to vector<8x1024xf32>
    %42 = arith.addf %40, %41 : vector<8x1024xf32>
    %c0_8 = arith.constant 0 : index
    %c0_9 = arith.constant 0 : index
    %43 = vector.load %arg3[%c0_8, %c0_9] : memref<8x1024xf32, #tpu.memory_space<vmem>>, vector<8x1024xf32>
    tpu.vector_store %arg3[%c0_8, %c0_9], %42 {strides = array<i32>} : memref<8x1024xf32, #tpu.memory_space<vmem>>, vector<8x1024xf32>,
    return
  }
  func.func @transform_0(%arg0: i32) -> i32 {
    %c0_i32 = arith.constant 0 : i32
    %c0_i32_0 = arith.constant 0 : i32
    return %c0_i32 : i32
  }
  func.func @transform_1(%arg0: i32) -> (i32, i32, i32) {
    %c0_i32 = arith.constant 0 : i32
    %c0_i32_0 = arith.constant 0 : i32
    %c0_i32_1 = arith.constant 0 : i32
    return %c0_i32, %arg0, %c0_i32_0 : i32, i32, i32
  }
  func.func @transform_2(%arg0: i32) -> (i32, i32) {
    %c0_i32 = arith.constant 0 : i32
    %c0_i32_0 = arith.constant 0 : i32
    return %arg0, %c0_i32 : i32, i32
  }
}

</mosaic_0001>

<llo_original>
// kernel: tpu_custom_call.1
$region0: #{tpu_custom_call.1}
  #allocation0 [shape = 'u32[]', space=smem, size = 0x4, offset = 0x4, fixed_abs, tag = 'smem constant byte address 0x4 - core index']
  #allocation1 [shape = 'u32[144,128]{1,0:T(1,128)}', space=vmem, size = 0x12000, scoped, tag = 'internal scratch']
  %s0 = inlined_call_operand.hbm [shape: f32[9], index: 0, kind: input, shape index: {}]
  %s1 = inlined_call_operand.hbm [shape: f32[2,8,1024], index: 1, kind: input, shape index: {}]
  %s2 = inlined_call_operand.hbm [shape: f32[8,1024], index: 2, kind: output, shape index: {}]
  %s3 = sld [smem:[#allocation0]]
  $region26: #{tpu_custom_call.1} parent=0
    _
  %s5 = ssub.s32 1, %s3
  %s6 = scalar_select 0, %s5, %s3
  $region1: #{tpu_custom_call.1} parent=0
    #allocation2 [shape = 'u8[512]{0}', space=smem, size = 0x200, scoped, tag = 'input window, operand 0, single buffered']
    #allocation3 [shape = 's32[1]{0}', space=sflag, size = 0x4, scoped, tag = 'scoped memory for tpu_custom_call.1']
    #allocation4 [shape = 's32[1]{0}', space=sflag, size = 0x4, scoped, tag = 'scoped memory for tpu_custom_call.1']
    #allocation5 [shape = 's32[1]{0}', space=sflag, size = 0x4, scoped, tag = 'scoped memory for tpu_custom_call.1']
    #allocation6 [shape = 'u8[65536]{0}', space=vmem, size = 0x10000, scoped, tag = 'input window, operand 1, single buffered']
    #allocation7 [shape = 'u8[32768]{0}', space=vmem, size = 0x8000, scoped, tag = 'output window, operand 0, single buffered']
    %7 = vsyncpa [#allocation5], 0
    %8 = vsyncpa [#allocation3], 0
    %9 = vsyncpa [#allocation4], 0
    // Predicated region
    $region2: #{tpu_custom_call.1} parent=1 // pred_check
      _
    $region3: #{tpu_custom_call.1} parent=1 // pred_check_branch
      %11 = sbr.rel (0) target = $region5
    $region4: #{tpu_custom_call.1} parent=1 // pred_region
      %s13 = ssub.s32 16, 16
      %14 = vsyncadd [#allocation5], %s13
      %17 = dma.hbm_to_smem %s0, 16, [#allocation2], [#allocation5]
    $region5: #{tpu_custom_call.1} parent=1 // pred_fallthru
      _
    // Predicated region
    $region6: #{tpu_custom_call.1} parent=1 // pred_check
      _
    $region7: #{tpu_custom_call.1} parent=1 // pred_check_branch
      %19 = sbr.rel (0) target = $region9
    $region8: #{tpu_custom_call.1} parent=1 // pred_region
      %s21 = ssub.s32 2048, 2048
      %22 = vsyncadd [#allocation3], %s21
      %s23 = sshll.u32 [#allocation6], 4
      %s24 = int_to_ptr.vmem [resolvable:$true] %s23
      %29 = dma.hbm_to_vmem [thread:$0]  %s1, 2048, %s24, [#allocation3], 1024, 1024, 64
    $region9: #{tpu_custom_call.1} parent=1 // pred_fallthru
      _
    // Predicated region
    $region10: #{tpu_custom_call.1} parent=1 // pred_check
      _
    $region11: #{tpu_custom_call.1} parent=1 // pred_check_branch
      %31 = sbr.rel (0) target = $region13
    $region12: #{tpu_custom_call.1} parent=1 // pred_region
      %32 = dma.done [#allocation5], 16
    $region13: #{tpu_custom_call.1} parent=1 // pred_fallthru
      _
    // Predicated region
    $region14: #{tpu_custom_call.1} parent=1 // pred_check
      _
    $region15: #{tpu_custom_call.1} parent=1 // pred_check_branch
      %34 = sbr.rel (0) target = $region17
    $region16: #{tpu_custom_call.1} parent=1 // pred_region
      %35 = dma.done [#allocation3], 2048
    $region17: #{tpu_custom_call.1} parent=1 // pred_fallthru
      _
    %36 = sfence
    %v37 = vld [vmem:[#allocation6] sm:$0xff]
    %v38 = vld [vmem:[#allocation6 + $0x8] sm:$0xff]
    %v39 = vld [vmem:[#allocation6 + $0x10] sm:$0xff]
    %v40 = vld [vmem:[#allocation6 + $0x18] sm:$0xff]
    %v41 = vld [vmem:[#allocation6 + $0x20] sm:$0xff]
    %v42 = vld [vmem:[#allocation6 + $0x28] sm:$0xff]
    %v43 = vld [vmem:[#allocation6 + $0x30] sm:$0xff]
    %v44 = vld [vmem:[#allocation6 + $0x38] sm:$0xff]
    %s45 = scalar_lea.vmem [#allocation6], 64
    %v46 = vld [vmem:[%s45] sm:$0xff]
    %v47 = vld [vmem:[%s45 + $0x8] sm:$0xff]
    %v48 = vld [vmem:[%s45 + $0x10] sm:$0xff]
    %v49 = vld [vmem:[%s45 + $0x18] sm:$0xff]
    %v50 = vld [vmem:[%s45 + $0x20] sm:$0xff]
    %v51 = vld [vmem:[%s45 + $0x28] sm:$0xff]
    %v52 = vld [vmem:[%s45 + $0x30] sm:$0xff]
    %v53 = vld [vmem:[%s45 + $0x38] sm:$0xff]
    %s54 = sld [smem:[#allocation2]]
    %s55 = sld [smem:[#allocation2 + $0x1]]
    %s56 = sld [smem:[#allocation2 + $0x2]]
    %s57 = sld [smem:[#allocation2 + $0x3]]
    %s58 = sld [smem:[#allocation2 + $0x4]]
    %s59 = sld [smem:[#allocation2 + $0x5]]
    %s60 = sld [smem:[#allocation2 + $0x6]]
    %s61 = sld [smem:[#allocation2 + $0x7]]
    %s62 = sld [smem:[#allocation2 + $0x8]]
    %v63 = vstv %s54
    %v64 = vmul.f32 %v37, %v63
    %v65 = vmul.f32 %v38, %v63
    %v66 = vmul.f32 %v39, %v63
    %v67 = vmul.f32 %v40, %v63
    %v68 = vmul.f32 %v41, %v63
    %v69 = vmul.f32 %v42, %v63
    %v70 = vmul.f32 %v43, %v63
    %v71 = vmul.f32 %v44, %v63
    %v72 = vstv %s55
    %v73 = vmul.f32 %v46, %v72
    %v74 = vmul.f32 %v47, %v72
    %v75 = vmul.f32 %v48, %v72
    %v76 = vmul.f32 %v49, %v72
    %v77 = vmul.f32 %v50, %v72
    %v78 = vmul.f32 %v51, %v72
    %v79 = vmul.f32 %v52, %v72
    %v80 = vmul.f32 %v53, %v72
    %v81 = vadd.f32 %v64, %v73
    %v82 = vadd.f32 %v65, %v74
    %v83 = vadd.f32 %v66, %v75
    %v84 = vadd.f32 %v67, %v76
    %v85 = vadd.f32 %v68, %v77
    %v86 = vadd.f32 %v69, %v78
    %v87 = vadd.f32 %v70, %v79
    %v88 = vadd.f32 %v71, %v80
    %v89 = vstv %s58
    %v90 = vadd.f32 %v81, %v89
    %v91 = vadd.f32 %v82, %v89
    %v92 = vadd.f32 %v83, %v89
    %v93 = vadd.f32 %v84, %v89
    %v94 = vadd.f32 %v85, %v89
    %v95 = vadd.f32 %v86, %v89
    %v96 = vadd.f32 %v87, %v89
    %v97 = vadd.f32 %v88, %v89
    %v98 = vtanh.pop %v90
    %v99 = vtanh.pop %v91
    %v100 = vtanh.pop %v92
    %v101 = vtanh.pop %v93
    %v102 = vtanh.pop %v94
    %v103 = vtanh.pop %v95
    %v104 = vtanh.pop %v96
    %v105 = vtanh.pop %v97
    %v106 = vstv %s56
    %v107 = vmul.f32 %v37, %v106
    %v108 = vmul.f32 %v38, %v106
    %v109 = vmul.f32 %v39, %v106
    %v110 = vmul.f32 %v40, %v106
    %v111 = vmul.f32 %v41, %v106
    %v112 = vmul.f32 %v42, %v106
    %v113 = vmul.f32 %v43, %v106
    %v114 = vmul.f32 %v44, %v106
    %v115 = vstv %s57
    %v116 = vmul.f32 %v46, %v115
    %v117 = vmul.f32 %v47, %v115
    %v118 = vmul.f32 %v48, %v115
    %v119 = vmul.f32 %v49, %v115
    %v120 = vmul.f32 %v50, %v115
    %v121 = vmul.f32 %v51, %v115
    %v122 = vmul.f32 %v52, %v115
    %v123 = vmul.f32 %v53, %v115
    %v124 = vadd.f32 %v107, %v116
    %v125 = vadd.f32 %v108, %v117
    %v126 = vadd.f32 %v109, %v118
    %v127 = vadd.f32 %v110, %v119
    %v128 = vadd.f32 %v111, %v120
    %v129 = vadd.f32 %v112, %v121
    %v130 = vadd.f32 %v113, %v122
    %v131 = vadd.f32 %v114, %v123
    %v132 = vstv %s59
    %v133 = vadd.f32 %v124, %v132
    %v134 = vadd.f32 %v125, %v132
    %v135 = vadd.f32 %v126, %v132
    %v136 = vadd.f32 %v127, %v132
    %v137 = vadd.f32 %v128, %v132
    %v138 = vadd.f32 %v129, %v132
    %v139 = vadd.f32 %v130, %v132
    %v140 = vadd.f32 %v131, %v132
    %v141 = vtanh.pop %v133
    %v142 = vtanh.pop %v134
    %v143 = vtanh.pop %v135
    %v144 = vtanh.pop %v136
    %v145 = vtanh.pop %v137
    %v146 = vtanh.pop %v138
    %v147 = vtanh.pop %v139
    %v148 = vtanh.pop %v140
    %v149 = vstv %s60
    %v150 = vmul.f32 %v98, %v149
    %v151 = vmul.f32 %v99, %v149
    %v152 = vmul.f32 %v100, %v149
    %v153 = vmul.f32 %v101, %v149
    %v154 = vmul.f32 %v102, %v149
    %v155 = vmul.f32 %v103, %v149
    %v156 = vmul.f32 %v104, %v149
    %v157 = vmul.f32 %v105, %v149
    %v158 = vstv %s61
    %v159 = vmul.f32 %v141, %v158
    %v160 = vmul.f32 %v142, %v158
    %v161 = vmul.f32 %v143, %v158
    %v162 = vmul.f32 %v144, %v158
    %v163 = vmul.f32 %v145, %v158
    %v164 = vmul.f32 %v146, %v158
    %v165 = vmul.f32 %v147, %v158
    %v166 = vmul.f32 %v148, %v158
    %v167 = vadd.f32 %v150, %v159
    %v168 = vadd.f32 %v151, %v160
    %v169 = vadd.f32 %v152, %v161
    %v170 = vadd.f32 %v153, %v162
    %v171 = vadd.f32 %v154, %v163
    %v172 = vadd.f32 %v155, %v164
    %v173 = vadd.f32 %v156, %v165
    %v174 = vadd.f32 %v157, %v166
    %v175 = vstv %s62
    %v176 = vadd.f32 %v167, %v175
    %v177 = vadd.f32 %v168, %v175
    %v178 = vadd.f32 %v169, %v175
    %v179 = vadd.f32 %v170, %v175
    %v180 = vadd.f32 %v171, %v175
    %v181 = vadd.f32 %v172, %v175
    %v182 = vadd.f32 %v173, %v175
    %v183 = vadd.f32 %v174, %v175
    %v184 = vmul.f32 %v176, 0.5
    %v185 = vmul.f32 %v177, 0.5
    %v186 = vmul.f32 %v178, 0.5
    %v187 = vmul.f32 %v179, 0.5
    %v188 = vmul.f32 %v180, 0.5
    %v189 = vmul.f32 %v181, 0.5
    %v190 = vmul.f32 %v182, 0.5
    %v191 = vmul.f32 %v183, 0.5
    %v192 = vtanh.pop %v184
    %v193 = vtanh.pop %v185
    %v194 = vtanh.pop %v186
    %v195 = vtanh.pop %v187
    %v196 = vtanh.pop %v188
    %v197 = vtanh.pop %v189
    %v198 = vtanh.pop %v190
    %v199 = vtanh.pop %v191
    %v200 = vmul.f32 %v192, 0.5
    %v201 = vmul.f32 %v193, 0.5
    %v202 = vmul.f32 %v194, 0.5
    %v203 = vmul.f32 %v195, 0.5
    %v204 = vmul.f32 %v196, 0.5
    %v205 = vmul.f32 %v197, 0.5
    %v206 = vmul.f32 %v198, 0.5
    %v207 = vmul.f32 %v199, 0.5
    %v208 = vadd.f32 %v200, 0.5
    %v209 = vadd.f32 %v201, 0.5
    %v210 = vadd.f32 %v202, 0.5
    %v211 = vadd.f32 %v203, 0.5
    %v212 = vadd.f32 %v204, 0.5
    %v213 = vadd.f32 %v205, 0.5
    %v214 = vadd.f32 %v206, 0.5
    %v215 = vadd.f32 %v207, 0.5
    %216 = vst [vmem:[#allocation7] sm:$0xff] %v208
    %217 = vst [vmem:[#allocation7 + $0x8] sm:$0xff] %v209
    %218 = vst [vmem:[#allocation7 + $0x10] sm:$0xff] %v210
    %219 = vst [vmem:[#allocation7 + $0x18] sm:$0xff] %v211
    %220 = vst [vmem:[#allocation7 + $0x20] sm:$0xff] %v212
    %221 = vst [vmem:[#allocation7 + $0x28] sm:$0xff] %v213
    %222 = vst [vmem:[#allocation7 + $0x30] sm:$0xff] %v214
    %223 = vst [vmem:[#allocation7 + $0x38] sm:$0xff] %v215
    // Predicated region
    $region18: #{tpu_custom_call.1} parent=1 // pred_check
      _
    $region19: #{tpu_custom_call.1} parent=1 // pred_check_branch
      %225 = sbr.rel (0) target = $region21
    $region20: #{tpu_custom_call.1} parent=1 // pred_region
      %s227 = ssub.s32 1024, 1024
      %228 = vsyncadd [#allocation4], %s227
      %s230 = sshll.u32 [#allocation7], 4
      %s231 = int_to_ptr.vmem [resolvable:$true] %s230
      %233 = dma.vmem_to_hbm [thread:$0]  %s231, 1024, %s2, [#allocation4]
    $region21: #{tpu_custom_call.1} parent=1 // pred_fallthru
      _
    // Predicated region
    $region22: #{tpu_custom_call.1} parent=1 // pred_check
      _
    $region23: #{tpu_custom_call.1} parent=1 // pred_check_branch
      %235 = sbr.rel (0) target = $region25
    $region24: #{tpu_custom_call.1} parent=1 // pred_region
      %236 = dma.done [#allocation4], 1024
    $region25: #{tpu_custom_call.1} parent=1 // pred_fallthru
      _
    %237 = vsyncpa [#allocation3], 1
    %238 = vsyncpa [#allocation4], 1
    %239 = vsyncpa [#allocation5], 1

</llo_original>
